<compile_context>
chip_gen: v5e
topology: v5e:2x2
jax: 0.10.0
libtpu: 0.0.40
codegen_flags: <defaults>
</compile_context>

<pallas_src>
import jax
import jax.numpy as jnp
from jax.experimental import pallas as pl
from jax.experimental.pallas import tpu as pltpu


def _identity_kernel(x_ref, o_ref):
    # Pure pass-through: copy the whole VMEM tile to the (aliased) output tile.
    o_ref[...] = x_ref[...]


def _round_up(n, m):
    return ((n + m - 1) // m) * m


def _choose_tiling(total, itemsize):
    """Pick (lanes, tile_rows, padded_rows) for a flat array of `total` elems.

    Preference order:
      1. A zero-padding layout (lanes divides total, tile_rows divides rows)
         with reasonably large tiles -> no extra HBM pad copy.
      2. Fall back to the widest lane-dense layout with <= one tile of padding.
    """
    pack = 8 * max(1, 4 // itemsize)              # packed-sublane granularity
    target_tile_bytes = 1 << 20                    # ~1 MiB tile, x4 when 2x-buffered

    best = None  # (lanes, tile_rows, padded_rows)
    for lanes in (512, 256, 128):
        if total % lanes:
            continue
        rows = total // lanes
        max_rows = max(pack,
                       (target_tile_bytes // (lanes * itemsize)) // pack * pack)
        if rows <= max_rows:
            # Single block along rows: block == full first dim, no pad needed.
            cand = (lanes, rows, rows)
        else:
            if rows % pack:
                continue
            # Largest divisor of `rows` that is a multiple of `pack`, <= max_rows.
            tile_rows = None
            t = max_rows
            while t >= pack:
                if rows % t == 0:
                    tile_rows = t
                    break
                t -= pack
            if tile_rows is None or tile_rows < 4 * pack:
                # Tiles would be tiny -> per-step overhead beats a pad copy.
                continue
            cand = (lanes, tile_rows, rows)
        if best is None or cand[0] * cand[1] > best[0] * best[1]:
            best = cand
    if best is not None:
        return best

    # Padded fallback: widest lanes for non-trivial inputs, 128 for tiny ones.
    lanes = 512 if total >= pack * 512 else 128
    tile_rows = max(pack,
                    (target_tile_bytes // (lanes * itemsize)) // pack * pack)
    rows = -(-total // lanes)  # cdiv
    if rows <= tile_rows:
        tile_rows = _round_up(rows, pack)
    padded_rows = _round_up(rows, tile_rows)
    return lanes, tile_rows, padded_rows


def _wrapper_forward_impl(x):
    """Pallas implementation of Wrapper.forward semantics (identity / no-op).

    Accepts any tensor, runs it through a tiled, input-aliased Pallas identity
    kernel, and returns a tensor with identical shape, dtype and values.
    """
    orig_shape = x.shape
    total = 1
    for d in orig_shape:
        total *= d
    if total == 0:
        return x

    itemsize = jnp.dtype(x.dtype).itemsize
    lanes, tile_rows, padded_rows = _choose_tiling(total, itemsize)
    padded_total = padded_rows * lanes

    flat = x.reshape(-1)
    if padded_total != total:
        flat = jnp.pad(flat, (0, padded_total - total))
    x2d = flat.reshape(padded_rows, lanes)

    grid = (padded_rows // tile_rows,)

    out2d = pl.pallas_call(
        _identity_kernel,
        out_shape=jax.ShapeDtypeStruct((padded_rows, lanes), x.dtype),
        grid_spec=pltpu.PrefetchScalarGridSpec(
            num_scalar_prefetch=0,
            grid=grid,
            in_specs=[pl.BlockSpec((tile_rows, lanes), lambda i: (i, 0))],
            out_specs=pl.BlockSpec((tile_rows, lanes), lambda i: (i, 0)),
        ),
        compiler_params=pltpu.CompilerParams(
            dimension_semantics=("parallel",),
        ),
        input_output_aliases={0: 0},
    )(x2d)

    out_flat = out2d.reshape(-1)
    if padded_total != total:
        out_flat = out_flat[:total]
    return out_flat.reshape(orig_shape)


# jit so any padded slab is an internal buffer and the alias is realized
# without caller-side donation concerns; shapes are static under jit.
wrapper_forward = jax.jit(_wrapper_forward_impl)


def wrapper_predict(x):
    # predict() is also an abstract stub in the reference; mirror forward.
    return wrapper_forward(x)


if __name__ == "__main__":
    key = jax.random.PRNGKey(0)

    # Small NCHW input consistent with a conv-style wrapper: B=2, C=4, H=W=16.
    x = jax.random.normal(key, (2, 4, 16, 16), dtype=jnp.float32)
    y = wrapper_forward(x)
    jax.block_until_ready(y)
    assert y.shape == x.shape
    assert y.dtype == x.dtype
    assert bool(jnp.all(y == x))

    # Irregular small shape to exercise the padded-tile path.
    x2 = jax.random.normal(jax.random.PRNGKey(1), (3, 5, 7), dtype=jnp.float32)
    y2 = wrapper_forward(x2)
    jax.block_until_ready(y2)
    assert y2.shape == x2.shape
    assert y2.dtype == x2.dtype
    assert bool(jnp.all(y2 == x2))

    print("KERNEL_OK")
</pallas_src>

<mosaic_0001>
module attributes {stable_mosaic.version = 11 : i64} {
  func.func @_identity_kernel(%arg0: i32, %arg1: memref<4x512xf32, #tpu.memory_space<vmem>>, %arg2: memref<4x512xf32, #tpu.memory_space<vmem>>) attributes {dimension_semantics = [#tpu.dimension_semantics<parallel>], iteration_bounds = array<i64: 1>, scalar_prefetch = 0 : i64, scratch_operands = 0 : i64, tpu.core_type = #tpu.core_type<tc>, window_params = [{transform_indices = @transform_0, window_bounds = array<i64: 4, 512>}, {transform_indices = @transform_1, window_bounds = array<i64: 4, 512>}]} {
    %c0 = arith.constant 0 : index
    %c0_0 = arith.constant 0 : index
    %0 = vector.load %arg1[%c0, %c0_0] : memref<4x512xf32, #tpu.memory_space<vmem>>, vector<4x512xf32>
    %c0_1 = arith.constant 0 : index
    %c0_2 = arith.constant 0 : index
    %1 = vector.load %arg2[%c0_1, %c0_2] : memref<4x512xf32, #tpu.memory_space<vmem>>, vector<4x512xf32>
    tpu.vector_store %arg2[%c0_1, %c0_2], %0 {strides = array<i32>} : memref<4x512xf32, #tpu.memory_space<vmem>>, vector<4x512xf32>,
    return
  }
  func.func @transform_0(%arg0: i32) -> (i32, i32) {
    %c0_i32 = arith.constant 0 : i32
    %c0_i32_0 = arith.constant 0 : i32
    return %arg0, %c0_i32 : i32, i32
  }
  func.func @transform_1(%arg0: i32) -> (i32, i32) {
    %c0_i32 = arith.constant 0 : i32
    %c0_i32_0 = arith.constant 0 : i32
    return %arg0, %c0_i32 : i32, i32
  }
}

</mosaic_0001>

<llo_original>
// kernel: _wrapper_forward_impl.1
$region0: #{_wrapper_forward_impl.1}
  #allocation0 [shape = 'u32[]', space=smem, size = 0x4, offset = 0x4, fixed_abs, tag = 'smem constant byte address 0x4 - core index']
  #allocation1 [shape = 'u32[72,128]{1,0:T(1,128)}', space=vmem, size = 0x9000, scoped, tag = 'internal scratch']
  %s0 = inlined_call_operand.vmem [shape: f32[4,512], index: 0, kind: input, shape index: {}, may-alias: {0,1}]
  %s1 = inlined_call_operand.vmem [shape: f32[4,512], index: 1, kind: output, shape index: {}, may-alias: {0,1}]
  %s2 = sld [smem:[#allocation0]]
  $region14: #{_wrapper_forward_impl.1} parent=0
    _
  %s4 = ssub.s32 1, %s2
  %s5 = scalar_select 0, %s4, %s2
  // Predicated region
  $region2: #{_wrapper_forward_impl.1} parent=0 // pred_check
    _
  $region3: #{_wrapper_forward_impl.1} parent=0 // pred_check_branch
    %7 = sbr.rel (0) target = $region5
  $region4: #{_wrapper_forward_impl.1} parent=0 // pred_region
    _
  $region5: #{_wrapper_forward_impl.1} parent=0 // pred_fallthru
    _
  %v8 = vld [vmem:[%s0] sm:$0xff]
  %v9 = vld [vmem:[%s0 + $0x8] sm:$0xff]
  %10 = vst [vmem:[%s1] sm:$0xff] %v8
  %11 = vst [vmem:[%s1 + $0x8] sm:$0xff] %v9
  // Predicated region
  $region6: #{_wrapper_forward_impl.1} parent=0 // pred_check
    _
  $region7: #{_wrapper_forward_impl.1} parent=0 // pred_check_branch
    %13 = sbr.rel (0) target = $region9
  $region8: #{_wrapper_forward_impl.1} parent=0 // pred_region
    _
  $region9: #{_wrapper_forward_impl.1} parent=0 // pred_fallthru
    _
  // Predicated region
  $region10: #{_wrapper_forward_impl.1} parent=0 // pred_check
    _
  $region11: #{_wrapper_forward_impl.1} parent=0 // pred_check_branch
    %15 = sbr.rel (0) target = $region13
  $region12: #{_wrapper_forward_impl.1} parent=0 // pred_region
    _
  $region13: #{_wrapper_forward_impl.1} parent=0 // pred_fallthru
    _

</llo_original>
